<compile_context>
chip_gen: v7x
topology: tpu7x:2x2x1
jax: 0.10.0
libtpu: 0.0.40
codegen_flags: <defaults>
</compile_context>

<pallas_src>
import jax
import jax.numpy as jnp
from jax.experimental import pallas as pl
from jax.experimental.pallas import tpu as pltpu

DEPTH_LOSS_WEIGHT = 1.0
DISTILL_WEIGHT = 1.0
_EPS = 1e-6

_LANE_COLS = 512   # lane-dense reduction width (multiple of 128)
_NUM_SPLITS = 2    # per-core partial sums (v7x has 2 TensorCores; harmless on 1-TC chips)


def _round_up(x, m):
    return ((x + m - 1) // m) * m


def _query_vmem_capacity():
    try:
        return int(pltpu.get_tpu_info().vmem_capacity_bytes)
    except Exception:
        return 64 * 1024 * 1024  # conservative (v7x-sized) fallback


_VMEM_CAP = _query_vmem_capacity()
if _VMEM_CAP >= 96 * 1024 * 1024:        # v5e / v6e: 128 MiB physical VMEM
    _MAX_BLOCK_ROWS = 4096               # 8 MiB f32 per input block (x2 in x2 bufs = 32 MiB)
    _MAX_HW_TILE = 4096
    _VMEM_LIMIT = 64 * 1024 * 1024
else:                                    # v7x: 64 MiB physical VMEM (and unknown chips)
    _MAX_BLOCK_ROWS = 2048               # 4 MiB f32 per input block (x2 x2 = 16 MiB)
    _MAX_HW_TILE = 2048
    _VMEM_LIMIT = 32 * 1024 * 1024


# ----------------------------------------------------------------------------
# Elementwise reduction ops (inputs already cast to f32 in-kernel)
# ----------------------------------------------------------------------------
def _log_l1(p, g):
    # Two plain logs; avoids the exact f32 divide (recip + Newton) of log((p+e)/(g+e)).
    return jnp.abs(jnp.log(p + _EPS) - jnp.log(g + _EPS))


def _sq_diff(a, b):
    d = a - b
    return d * d


# ----------------------------------------------------------------------------
# Lane-dense global-sum reduction kernel
# ----------------------------------------------------------------------------
def _as_lane_dense(x):
    """Flatten to (rows, _LANE_COLS).  Only the sub-_LANE_COLS tail is padded with zeros
    (reduction-neutral for both ops above); when the element count is already a multiple
    of _LANE_COLS the reshape is a free metadata change."""
    flat = x.reshape(-1)
    n = flat.shape[0]
    total = _round_up(max(n, 1), _LANE_COLS)
    if total != n:
        flat = jnp.pad(flat, (0, total - n))
    return flat.reshape(total // _LANE_COLS, _LANE_COLS)


def _reduce_sum(op, a, b, *, max_block_rows=None):
    """sum(op(a, b)) over all elements via a lane-dense Pallas reduction.

    Grid is (splits, blocks_per_split): the leading "parallel" axis emits per-core
    partial sums (summed in JAX) so multi-TensorCore chips split the HBM-bound work.
    The split uses cdiv + a clamped index_map + an in-kernel range gate, so any block
    count (odd or even) uses all splits.  Only the last (ragged) block pays mask cost.
    """
    assert a.shape == b.shape
    a2 = _as_lane_dense(a)
    b2 = _as_lane_dense(b)
    rows, cols = a2.shape

    mbr = max_block_rows if max_block_rows is not None else _MAX_BLOCK_ROWS
    block_rows = min(mbr, _round_up(rows, 8))
    num_blocks = pl.cdiv(rows, block_rows)
    splits = _NUM_SPLITS if num_blocks >= _NUM_SPLITS else 1
    bps = pl.cdiv(num_blocks, splits)                  # blocks per split
    uneven = (num_blocks % splits) != 0                # some steps are redundant (skipped)
    needs_mask = (rows % block_rows) != 0              # ragged last block

    def kernel(a_ref, b_ref, out_ref, acc_ref):
        s = pl.program_id(0)
        j = pl.program_id(1)

        @pl.when(j == 0)
        def _init():
            acc_ref[...] = jnp.zeros_like(acc_ref)

        def accumulate(v):
            # VPU-only sublane fold into a vreg-shaped scratch; the single cross-lane
            # (XLU) reduction is deferred to the final grid step.
            acc_ref[...] += jnp.sum(v.reshape(block_rows // 8, 8, cols), axis=0)

        val = op(a_ref[...].astype(jnp.float32), b_ref[...].astype(jnp.float32))
        gb = s * bps + j  # global block index

        if needs_mask or uneven:
            in_range = gb < num_blocks
            if needs_mask:
                is_last = gb == num_blocks - 1
                full_cond = jnp.logical_and(in_range, jnp.logical_not(is_last))
            else:
                full_cond = in_range

            @pl.when(full_cond)
            def _full():
                accumulate(val)

            if needs_mask:
                @pl.when(is_last)
                def _ragged():
                    # (block_rows, 1) iota broadcast against cols; select (never multiply)
                    # so OOB garbage (possibly NaN through op) is discarded.
                    row = jax.lax.broadcasted_iota(jnp.int32, (block_rows, 1), 0)
                    keep = (gb * block_rows + row) < rows
                    accumulate(jnp.where(keep, val, 0.0))
        else:
            accumulate(val)

        @pl.when(j == pl.num_programs(1) - 1)
        def _finalize():
            out_ref[...] = jnp.sum(acc_ref[...]).reshape(1, 1, 1)

    # Clamp so redundant steps (uneven split) DMA a valid block; kernel skips them.
    def idx(s, j):
        return (jnp.minimum(s * bps + j, num_blocks - 1), 0)

    partials = pl.pallas_call(
        kernel,
        out_shape=jax.ShapeDtypeStruct((splits, 1, 1), jnp.float32),
        grid_spec=pltpu.PrefetchScalarGridSpec(
            num_scalar_prefetch=0,
            grid=(splits, bps),
            in_specs=[
                pl.BlockSpec((block_rows, cols), idx),
                pl.BlockSpec((block_rows, cols), idx),
            ],
            out_specs=pl.BlockSpec((1, 1, 1), lambda s, j: (s, 0, 0)),
            scratch_shapes=[pltpu.VMEM((8, cols), jnp.float32)],
        ),
        compiler_params=pltpu.CompilerParams(
            dimension_semantics=("parallel", "arbitrary"),
            vmem_limit_bytes=_VMEM_LIMIT,
        ),
    )(a2, b2)
    return jnp.sum(partials)


# ----------------------------------------------------------------------------
# Feature distillation kernels (channels-first: no NHWC transposes needed)
# ----------------------------------------------------------------------------
def _hw_tiling(hw, per_col_bytes, cap=None):
    """Spatial tile sized from the per-generation VMEM budget (double-buffered tiles)."""
    cap = cap if cap is not None else _MAX_HW_TILE
    budget = _VMEM_LIMIT // 2  # leave headroom for W, accumulator, compiler scratch
    tile = (budget // max(per_col_bytes, 1)) // 128 * 128
    tile = max(128, min(cap, tile))
    if hw <= tile:
        return hw, 1, False     # full-extent block (allowed even if not multiple of 128)
    return tile, pl.cdiv(hw, tile), (hw % tile) != 0


def _fused_proj_mse_sum(S, T, W2d, *, max_hw_tile=None):
    """sum((S - conv1x1(T; W2d))^2) with matching spatial dims, fully fused:
    per batch b:  P_b = W2d(cs,ct) @ T_b(ct,HW) stays in VMEM, squared error is
    accumulated on the fly (no HBM round-trip of P, no layout ops)."""
    n, cs, h, w = S.shape
    ct = T.shape[1]
    hw = h * w
    s3 = S.reshape(n, cs, hw)   # free reshapes (contiguous NCHW)
    t3 = T.reshape(n, ct, hw)

    # Tiny feature maps: collapse the batch into the lane dimension so vregs are
    # (closer to) 128-lane dense and the level runs in a single grid step.
    if hw < 128 and n > 1:
        s3 = jnp.transpose(s3, (1, 0, 2)).reshape(1, cs, n * hw)
        t3 = jnp.transpose(t3, (1, 0, 2)).reshape(1, ct, n * hw)
        hw = n * hw
        n = 1

    fold = (cs % 8 == 0)
    acc_rows = 8 if fold else cs
    per_col = 2 * (cs * S.dtype.itemsize + ct * T.dtype.itemsize) + acc_rows * 4
    hw_tile, nhw, needs_mask = _hw_tiling(hw, per_col, cap=max_hw_tile)

    # Split the spatial/block axis across cores too (v7x: n==1 levels still use both TCs).
    splits = 2 if nhw >= 2 else 1
    bps = pl.cdiv(nhw, splits)
    uneven = (nhw % splits) != 0

    def kernel(w_ref, s_ref, t_ref, out_ref, acc_ref):
        o = pl.program_id(0)
        j = pl.program_id(1)

        @pl.when(j == 0)
        def _init():
            acc_ref[...] = jnp.zeros_like(acc_ref)

        def accumulate(v):
            if fold:
                acc_ref[...] += jnp.sum(v.reshape(cs // 8, 8, hw_tile), axis=0)
            else:
                acc_ref[...] += v

        # MXU gets native-dtype operands; accumulation is f32 via preferred_element_type.
        p = jnp.dot(w_ref[...], t_ref[0], preferred_element_type=jnp.float32)  # (cs, hw_tile)
        d = s_ref[0].astype(jnp.float32) - p
        sq = d * d

        gj = (o % splits) * bps + j   # global column-block index
        if needs_mask or uneven:
            in_range = gj < nhw
            if needs_mask:
                is_last = gj == nhw - 1
                full_cond = jnp.logical_and(in_range, jnp.logical_not(is_last))
            else:
                full_cond = in_range

            @pl.when(full_cond)
            def _full():
                accumulate(sq)

            if needs_mask:
                @pl.when(is_last)
                def _ragged():
                    col = jax.lax.broadcasted_iota(jnp.int32, (1, hw_tile), 1)
                    keep = (gj * hw_tile + col) < hw
                    accumulate(jnp.where(keep, sq, 0.0))
        else:
            accumulate(sq)

        @pl.when(j == pl.num_programs(1) - 1)
        def _finalize():
            out_ref[...] = jnp.sum(acc_ref[...]).reshape(1, 1, 1)

    def data_idx(o, j):
        return (o // splits, 0, jnp.minimum((o % splits) * bps + j, nhw - 1))

    partials = pl.pallas_call(
        kernel,
        out_shape=jax.ShapeDtypeStruct((n * splits, 1, 1), jnp.float32),
        grid_spec=pltpu.PrefetchScalarGridSpec(
            num_scalar_prefetch=0,
            grid=(n * splits, bps),
            in_specs=[
                pl.BlockSpec((cs, ct), lambda o, j: (0, 0)),
                pl.BlockSpec((1, cs, hw_tile), data_idx),
                pl.BlockSpec((1, ct, hw_tile), data_idx),
            ],
            out_specs=pl.BlockSpec((1, 1, 1), lambda o, j: (o, 0, 0)),
            scratch_shapes=[pltpu.VMEM((acc_rows, hw_tile), jnp.float32)],
        ),
        compiler_params=pltpu.CompilerParams(
            dimension_semantics=("parallel", "arbitrary"),
            vmem_limit_bytes=_VMEM_LIMIT,
        ),
    )(W2d, s3, t3)
    return jnp.sum(partials)


def _project_1x1(T, W2d, out_dtype):
    """1x1 conv in NCHW, unfused fallback (only used when a spatial resize is needed
    between projection and MSE).  Output is written directly in the student dtype."""
    n, ct, h, w = T.shape
    cs = W2d.shape[0]
    hw = h * w
    t3 = T.reshape(n, ct, hw)
    out_bytes = jnp.dtype(out_dtype).itemsize
    per_col = 2 * (ct * T.dtype.itemsize + cs * out_bytes)
    hw_tile, nhw, _ = _hw_tiling(hw, per_col)

    def kernel(w_ref, t_ref, o_ref):
        o_ref[0] = jnp.dot(w_ref[...], t_ref[0],
                           preferred_element_type=jnp.float32).astype(o_ref.dtype)

    out = pl.pallas_call(
        kernel,
        out_shape=jax.ShapeDtypeStruct((n, cs, hw), out_dtype),
        grid_spec=pltpu.PrefetchScalarGridSpec(
            num_scalar_prefetch=0,
            grid=(n, nhw),
            in_specs=[
                pl.BlockSpec((cs, ct), lambda b, j: (0, 0)),
                pl.BlockSpec((1, ct, hw_tile), lambda b, j: (b, 0, j)),
            ],
            out_specs=pl.BlockSpec((1, cs, hw_tile), lambda b, j: (b, 0, j)),
        ),
        compiler_params=pltpu.CompilerParams(
            dimension_semantics=("parallel", "parallel"),
            vmem_limit_bytes=_VMEM_LIMIT,
        ),
    )(W2d, t3)
    return out.reshape(n, cs, h, w)


# ----------------------------------------------------------------------------
# Module
# ----------------------------------------------------------------------------
class DistillationLoss:
    """JAX/Pallas port of the PyTorch DistillationLoss module (forward = depth loss)."""

    def __init__(self, student_channels, teacher_channels, key):
        # nn.Conv2d(ct, cs, kernel_size=1, bias=False) -> weight shape (cs, ct, 1, 1)
        self.proj_weights = []
        for i, (ct, cs) in enumerate(zip(teacher_channels, student_channels)):
            k = jax.random.fold_in(key, i)
            w = jax.random.normal(k, (cs, ct, 1, 1), jnp.float32) / jnp.sqrt(float(ct))
            self.proj_weights.append(w)

    # ---- depth loss: mean(|log(pred+eps) - log(gt+eps)|) * DEPTH_LOSS_WEIGHT ----
    def compute_depth_loss(self, pred_depth, gt_depth):
        if gt_depth.shape[2:] != pred_depth.shape[2:]:
            # TODO(synk): jax.image.resize half-pixel bilinear approximates (does not
            # bit-match) torch F.interpolate(mode='bilinear', align_corners=False).
            gt_depth = jax.image.resize(
                gt_depth, gt_depth.shape[:2] + pred_depth.shape[2:], method="bilinear"
            )
        assert pred_depth.shape == gt_depth.shape
        total = _reduce_sum(_log_l1, pred_depth, gt_depth)
        return (total / pred_depth.size) * DEPTH_LOSS_WEIGHT

    # ---- feature distillation: sum_i MSE(S_i, resize(proj_i(T_i))) * DISTILL_WEIGHT ----
    def compute_feature_loss(self, student_feats, teacher_feats):
        feat_loss = jnp.float32(0.0)
        for idx, (S, T) in enumerate(zip(student_feats, teacher_feats)):
            T = jax.lax.stop_gradient(T)  # T.detach()
            W2d = self.proj_weights[idx][:, :, 0, 0]  # (cs, ct)
            if T.shape[2:] == S.shape[2:]:
                # fused 1x1 projection + squared-error reduction (common case)
                sq_sum = _fused_proj_mse_sum(S, T, W2d)
            else:
                # TODO(synk): fuse the bilinear resize (as two interpolation matmuls) with
                # the projection + MSE reduction to avoid the extra HBM round-trips.
                P = _project_1x1(T, W2d, S.dtype)
                P = jax.image.resize(P, P.shape[:2] + S.shape[2:], method="bilinear")
                sq_sum = _reduce_sum(_sq_diff, S, P)
            feat_loss = feat_loss + sq_sum / S.size
        return feat_loss * DISTILL_WEIGHT

    def forward(self, pred_depth, gt_depth, student_feats, teacher_feats):
        dloss = self.compute_depth_loss(pred_depth, gt_depth)
        total = dloss
        # Return the JAX scalar (torch used dloss.item(); avoiding float() keeps the
        # dispatch asynchronous and jit-compatible).
        return total, {"depth_loss": dloss}


# ----------------------------------------------------------------------------
# Pure-JAX references (for correctness checking)
# ----------------------------------------------------------------------------
def _ref_depth_loss(pred, gt):
    if gt.shape[2:] != pred.shape[2:]:
        gt = jax.image.resize(gt, gt.shape[:2] + pred.shape[2:], method="bilinear")
    return jnp.mean(jnp.abs(jnp.log(pred + _EPS) - jnp.log(gt + _EPS))) * DEPTH_LOSS_WEIGHT


def _ref_feature_loss(sfeats, tfeats, weights):
    total = jnp.float32(0.0)
    for S, T, W in zip(sfeats, tfeats, weights):
        P = jnp.einsum("nchw,oc->nohw", T, W[:, :, 0, 0],
                       precision=jax.lax.Precision.HIGHEST).astype(S.dtype)
        if P.shape[2:] != S.shape[2:]:
            P = jax.image.resize(P, P.shape[:2] + S.shape[2:], method="bilinear")
        total = total + jnp.mean((S - P) ** 2)
    return total * DISTILL_WEIGHT


# ----------------------------------------------------------------------------
# Demo
# ----------------------------------------------------------------------------
if __name__ == "__main__":
    key = jax.random.PRNGKey(0)
    keys = jax.random.split(key, 16)

    # --- depth loss, matching resolution (single-block path) ---
    pred_depth = jax.random.uniform(keys[0], (2, 1, 16, 16), jnp.float32, 0.1, 10.0)
    gt_depth = jax.random.uniform(keys[1], (2, 1, 16, 16), jnp.float32, 0.1, 10.0)

    student_channels = [32, 64, 32]
    teacher_channels = [48, 96, 48]
    student_feats = [
        jax.random.normal(keys[2], (2, 32, 8, 8), jnp.float32),
        jax.random.normal(keys[3], (2, 64, 4, 4), jnp.float32),
        jax.random.normal(keys[4], (2, 32, 8, 8), jnp.float32),
    ]
    teacher_feats = [
        jax.random.normal(keys[5], (2, 48, 8, 8), jnp.float32),
        jax.random.normal(keys[6], (2, 96, 4, 4), jnp.float32),
        jax.random.normal(keys[7], (2, 48, 16, 16), jnp.float32),  # mismatched -> resize path
    ]

    model = DistillationLoss(student_channels, teacher_channels, keys[8])

    total, logs = model.forward(pred_depth, gt_depth, student_feats, teacher_feats)
    total = jax.block_until_ready(total)
    ref_total = _ref_depth_loss(pred_depth, gt_depth)
    assert jnp.allclose(total, ref_total, rtol=1e-4, atol=1e-6), (total, ref_total)

    # --- depth loss, awkward size: lane-tail pad, ragged-row mask, GT bilinear resize ---
    pred_odd = jax.random.uniform(keys[9], (2, 3, 33, 33), jnp.float32, 0.1, 10.0)
    gt_odd = jax.random.uniform(keys[10], (2, 3, 17, 17), jnp.float32, 0.1, 10.0)
    d_odd = jax.block_until_ready(model.compute_depth_loss(pred_odd, gt_odd))
    ref_odd = _ref_depth_loss(pred_odd, gt_odd)
    assert jnp.allclose(d_odd, ref_odd, rtol=1e-4, atol=1e-6), (d_odd, ref_odd)

    # --- reduction kernel: multi-block grid, robust 2-way core split (uneven), ragged
    #     last block -- exercised on small data via a small forced block size ---
    xa = jax.random.uniform(keys[11], (1, 1, 68, 128), jnp.float32, 0.1, 10.0)
    xb = jax.random.uniform(keys[12], (1, 1, 68, 128), jnp.float32, 0.1, 10.0)
    got = jax.block_until_ready(_reduce_sum(_log_l1, xa, xb, max_block_rows=8))
    ref = jnp.sum(jnp.abs(jnp.log(xa + _EPS) - jnp.log(xb + _EPS)))
    assert jnp.allclose(got, ref, rtol=1e-4, atol=1e-4), (got, ref)

    # --- fused projection+MSE kernel: spatial tiling, ragged column mask, core split ---
    S4 = jax.random.normal(keys[13], (1, 16, 10, 20), jnp.float32)
    T4 = jax.random.normal(keys[14], (1, 24, 10, 20), jnp.float32)
    W4 = jax.random.normal(keys[15], (16, 24), jnp.float32) * 0.1
    got4 = jax.block_until_ready(_fused_proj_mse_sum(S4, T4, W4, max_hw_tile=128))
    P4 = jnp.einsum("nchw,oc->nohw", T4, W4, precision=jax.lax.Precision.HIGHEST)
    ref4 = jnp.sum((S4 - P4) ** 2)
    assert jnp.allclose(got4, ref4, rtol=1e-4, atol=1e-4), (got4, ref4)

    # --- feature distillation: two fused (batch-collapsed) levels + one resize level ---
    floss = jax.block_until_ready(model.compute_feature_loss(student_feats, teacher_feats))
    ref_floss = _ref_feature_loss(student_feats, teacher_feats, model.proj_weights)
    assert jnp.allclose(floss, ref_floss, rtol=1e-4, atol=1e-5), (floss, ref_floss)

    print("KERNEL_OK")
</pallas_src>

<mosaic_0001>
module attributes {stable_mosaic.version = 11 : i64} {
  func.func @kernel(%arg0: i32, %arg1: i32, %arg2: memref<8x512xf32, #tpu.memory_space<vmem>>, %arg3: memref<8x512xf32, #tpu.memory_space<vmem>>, %arg4: memref<1x1x1xf32, #tpu.memory_space<vmem>>, %arg5: memref<8x512xf32, #tpu.memory_space<vmem>>) attributes {dimension_semantics = [#tpu.dimension_semantics<parallel>, #tpu.dimension_semantics<arbitrary>], iteration_bounds = array<i64: 1, 1>, scalar_prefetch = 0 : i64, scratch_operands = 1 : i64, tpu.core_type = #tpu.core_type<tc>, window_params = [{transform_indices = @transform_0, window_bounds = array<i64: 8, 512>}, {transform_indices = @transform_1, window_bounds = array<i64: 8, 512>}, {transform_indices = @transform_2, window_bounds = array<i64: 1, 1, 1>}]} {
    %c0_i32 = arith.constant 0 : i32
    %0 = arith.cmpi eq, %arg1, %c0_i32 : i32
    %1 = arith.extui %0 : i1 to i32
    %c0_i32_0 = arith.constant 0 : i32
    %2 = arith.cmpi ne, %1, %c0_i32_0 : i32
    scf.if %2 {
      %cst_11 = arith.constant 0.000000e+00 : f32
      %26 = vector.broadcast %cst_11 : f32 to vector<8x512xf32>
      %c0_12 = arith.constant 0 : index
      %c0_13 = arith.constant 0 : index
      %27 = vector.load %arg5[%c0_12, %c0_13] : memref<8x512xf32, #tpu.memory_space<vmem>>, vector<8x512xf32>
      tpu.vector_store %arg5[%c0_12, %c0_13], %26 {strides = array<i32>} : memref<8x512xf32, #tpu.memory_space<vmem>>, vector<8x512xf32>,
    } else {
    }
    %c0 = arith.constant 0 : index
    %c0_1 = arith.constant 0 : index
    %3 = vector.load %arg2[%c0, %c0_1] : memref<8x512xf32, #tpu.memory_space<vmem>>, vector<8x512xf32>
    %c0_2 = arith.constant 0 : index
    %c0_3 = arith.constant 0 : index
    %4 = vector.load %arg3[%c0_2, %c0_3] : memref<8x512xf32, #tpu.memory_space<vmem>>, vector<8x512xf32>
    %cst = arith.constant 9.99999997E-7 : f32
    %5 = vector.broadcast %cst : f32 to vector<8x512xf32>
    %6 = arith.addf %3, %5 : vector<8x512xf32>
    %7 = math.log %6 : vector<8x512xf32>
    %cst_4 = arith.constant 9.99999997E-7 : f32
    %8 = vector.broadcast %cst_4 : f32 to vector<8x512xf32>
    %9 = arith.addf %4, %8 : vector<8x512xf32>
    %10 = math.log %9 : vector<8x512xf32>
    %11 = arith.subf %7, %10 : vector<8x512xf32>
    %12 = math.absf %11 : vector<8x512xf32>
    %c1_i32 = arith.constant 1 : i32
    %13 = arith.muli %arg0, %c1_i32 : i32
    %14 = arith.addi %13, %arg1 : i32
    %c1_i32_5 = arith.constant 1 : i32
    %15 = arith.cmpi slt, %14, %c1_i32_5 : i32
    %c0_i32_6 = arith.constant 0 : i32
    %16 = arith.cmpi eq, %14, %c0_i32_6 : i32
    %true = arith.constant true
    %17 = arith.xori %16, %true : i1
    %18 = arith.andi %15, %17 : i1
    %19 = arith.extui %18 : i1 to i32
    %c0_i32_7 = arith.constant 0 : i32
    %20 = arith.cmpi ne, %19, %c0_i32_7 : i32
    scf.if %20 {
      %c0_11 = arith.constant 0 : index
      %c0_12 = arith.constant 0 : index
      %26 = vector.load %arg5[%c0_11, %c0_12] : memref<8x512xf32, #tpu.memory_space<vmem>>, vector<8x512xf32>
      %27 = vector.shape_cast %12 : vector<8x512xf32> to vector<1x8x512xf32>
      %cst_13 = arith.constant dense<0.000000e+00> : vector<8x512xf32>
      %28 = vector.multi_reduction <add>, %27, %cst_13 [0] : vector<1x8x512xf32> to vector<8x512xf32>
      %29 = arith.addf %26, %28 : vector<8x512xf32>
      %c0_14 = arith.constant 0 : index
      %c0_15 = arith.constant 0 : index
      %30 = vector.load %arg5[%c0_14, %c0_15] : memref<8x512xf32, #tpu.memory_space<vmem>>, vector<8x512xf32>
      tpu.vector_store %arg5[%c0_14, %c0_15], %29 {strides = array<i32>} : memref<8x512xf32, #tpu.memory_space<vmem>>, vector<8x512xf32>,
    } else {
    }
    %21 = arith.extui %16 : i1 to i32
    %c0_i32_8 = arith.constant 0 : i32
    %22 = arith.cmpi ne, %21, %c0_i32_8 : i32
    scf.if %22 {
      %26 = tpu.iota {dimensions = array<i32: 0>} : vector<8x1xi32>
      %c8_i32 = arith.constant 8 : i32
      %27 = arith.muli %14, %c8_i32 : i32
      %28 = vector.broadcast %27 : i32 to vector<8x1xi32>
      %29 = arith.addi %28, %26 : vector<8x1xi32>
      %c1_i32_11 = arith.constant 1 : i32
      %30 = vector.broadcast %c1_i32_11 : i32 to vector<8x1xi32>
      %31 = arith.cmpi slt, %29, %30 : vector<8x1xi32>
      %cst_12 = arith.constant 0.000000e+00 : f32
      %32 = vector.shape_cast %31 : vector<8x1xi1> to vector<8x1xi1>
      %33 = vector.broadcast %32 : vector<8x1xi1> to vector<8x512xi1>
      %34 = vector.broadcast %cst_12 : f32 to vector<8x512xf32>
      %35 = arith.select %33, %12, %34 : vector<8x512xi1>, vector<8x512xf32>
      %c0_13 = arith.constant 0 : index
      %c0_14 = arith.constant 0 : index
      %36 = vector.load %arg5[%c0_13, %c0_14] : memref<8x512xf32, #tpu.memory_space<vmem>>, vector<8x512xf32>
      %37 = vector.shape_cast %35 : vector<8x512xf32> to vector<1x8x512xf32>
      %cst_15 = arith.constant dense<0.000000e+00> : vector<8x512xf32>
      %38 = vector.multi_reduction <add>, %37, %cst_15 [0] : vector<1x8x512xf32> to vector<8x512xf32>
      %39 = arith.addf %36, %38 : vector<8x512xf32>
      %c0_16 = arith.constant 0 : index
      %c0_17 = arith.constant 0 : index
      %40 = vector.load %arg5[%c0_16, %c0_17] : memref<8x512xf32, #tpu.memory_space<vmem>>, vector<8x512xf32>
      tpu.vector_store %arg5[%c0_16, %c0_17], %39 {strides = array<i32>} : memref<8x512xf32, #tpu.memory_space<vmem>>, vector<8x512xf32>,
    } else {
    }
    %c0_i32_9 = arith.constant 0 : i32
    %23 = arith.cmpi eq, %arg1, %c0_i32_9 : i32
    %24 = arith.extui %23 : i1 to i32
    %c0_i32_10 = arith.constant 0 : i32
    %25 = arith.cmpi ne, %24, %c0_i32_10 : i32
    scf.if %25 {
      %c0_11 = arith.constant 0 : index
      %c0_12 = arith.constant 0 : index
      %26 = vector.load %arg5[%c0_11, %c0_12] : memref<8x512xf32, #tpu.memory_space<vmem>>, vector<8x512xf32>
      %27 = vector.shape_cast %26 : vector<8x512xf32> to vector<1x8x512xf32>
      %cst_13 = arith.constant dense<0.000000e+00> : vector<1xf32>
      %28 = vector.multi_reduction <add>, %27, %cst_13 [1, 2] : vector<1x8x512xf32> to vector<1xf32>
      %29 = vector.shape_cast %28 : vector<1xf32> to vector<1x1x1xf32>
      %30 = vector.extract %29[0, 0, 0] : f32 from vector<1x1x1xf32>
      %31 = vector.broadcast %30 : f32 to vector<1x1x1xf32>
      %c0_14 = arith.constant 0 : index
      %c0_15 = arith.constant 0 : index
      %c0_16 = arith.constant 0 : index
      %32 = vector.load %arg4[%c0_14, %c0_15, %c0_16] : memref<1x1x1xf32, #tpu.memory_space<vmem>>, vector<1x1x1xf32>
      tpu.vector_store %arg4[%c0_14, %c0_15, %c0_16], %31 {strides = array<i32>} : memref<1x1x1xf32, #tpu.memory_space<vmem>>, vector<1x1x1xf32>,
    } else {
    }
    return
  }
  func.func @transform_0(%arg0: i32, %arg1: i32) -> (i32, i32) {
    %c1_i32 = arith.constant 1 : i32
    %0 = arith.muli %arg0, %c1_i32 : i32
    %1 = arith.addi %0, %arg1 : i32
    %c0_i32 = arith.constant 0 : i32
    %2 = arith.minsi %1, %c0_i32 : i32
    %c0_i32_0 = arith.constant 0 : i32
    %c0_i32_1 = arith.constant 0 : i32
    return %2, %c0_i32_0 : i32, i32
  }
  func.func @transform_1(%arg0: i32, %arg1: i32) -> (i32, i32) {
    %c1_i32 = arith.constant 1 : i32
    %0 = arith.muli %arg0, %c1_i32 : i32
    %1 = arith.addi %0, %arg1 : i32
    %c0_i32 = arith.constant 0 : i32
    %2 = arith.minsi %1, %c0_i32 : i32
    %c0_i32_0 = arith.constant 0 : i32
    %c0_i32_1 = arith.constant 0 : i32
    return %2, %c0_i32_0 : i32, i32
  }
  func.func @transform_2(%arg0: i32, %arg1: i32) -> (i32, i32, i32) {
    %c0_i32 = arith.constant 0 : i32
    %c0_i32_0 = arith.constant 0 : i32
    %c0_i32_1 = arith.constant 0 : i32
    return %arg0, %c0_i32, %c0_i32_0 : i32, i32, i32
  }
}

</mosaic_0001>

<llo_original>
// kernel: tpu_custom_call.1
$region0: #{tpu_custom_call.1}
  #allocation0 [shape = 'u32[]', space=smem, size = 0x4, offset = 0x4, fixed_abs, tag = 'smem constant byte address 0x4 - core index']
  #allocation1 [shape = 'u32[144,128]{1,0:T(1,128)}', space=vmem, size = 0x12000, scoped, tag = 'internal scratch']
  #allocation2 [shape = 'f32[8,512]{1,0:T(8,128)}', space=vmem, size = 0x4000, scoped, tag = 'scratch operand']
  %s0 = inlined_call_operand.hbm [shape: f32[1,512], index: 0, kind: input, shape index: {}]
  %s1 = inlined_call_operand.hbm [shape: f32[1,512], index: 1, kind: input, shape index: {}]
  %s2 = inlined_call_operand.hbm [shape: f32[1,1,1], index: 2, kind: output, shape index: {}]
  %s3 = sld [smem:[#allocation0]]
  $region42: #{tpu_custom_call.1} parent=0
    _
  %s5 = ssub.s32 1, %s3
  %s6 = scalar_select 0, %s5, %s3
  $region1: #{tpu_custom_call.1} parent=0
    #allocation3 [shape = 'u8[16384]{0}', space=vmem, size = 0x4000, scoped, tag = 'input window, operand 0, single buffered']
    #allocation4 [shape = 's32[1]{0}', space=sflag, size = 0x4, scoped, tag = 'scoped memory for tpu_custom_call.1']
    #allocation5 [shape = 's32[1]{0}', space=sflag, size = 0x4, scoped, tag = 'scoped memory for tpu_custom_call.1']
    #allocation6 [shape = 'u8[16384]{0}', space=vmem, size = 0x4000, scoped, tag = 'input window, operand 1, single buffered']
    #allocation7 [shape = 's32[1]{0}', space=sflag, size = 0x4, scoped, tag = 'scoped memory for tpu_custom_call.1']
    #allocation8 [shape = 'u8[512]{0}', space=vmem, size = 0x400, scoped, tag = 'output window, operand 0, single buffered']
    %7 = vsyncpa [#allocation4], 0
    %8 = vsyncpa [#allocation7], 0
    %9 = vsyncpa [#allocation5], 0
    // Predicated region
    $region2: #{tpu_custom_call.1} parent=1 // pred_check
      _
    $region3: #{tpu_custom_call.1} parent=1 // pred_check_branch
      %11 = sbr.rel (0) target = $region5
    $region4: #{tpu_custom_call.1} parent=1 // pred_region
      %s12 = sadd.s32 0, 0
      %p13 = scmp.lt.s32.totalorder %s12, 0
      %s14 = scalar_select %p13, %s12, 0
      %s15 = smul.u32 8, %s14
      %s16 = ssub.s32 1, %s15
      %s17 = smul.u32 16, %s16
      %s18 = smul.u32 %s17, 4
      %s20 = ssub.s32 512, %s18
      %21 = vsyncadd [#allocation4], %s20
      %p22 = scmp.ne.s32.totalorder 0, %s18
      %s23 = smul.addr %s15, 4
      %s24 = smul.addr %s23, 16
      %s25 = scalar_lea.hbm %s0, %s24
      %s26 = smul.u32 4, %s16
      %s27 = sshll.u32 [#allocation3], 4
      %s28 = int_to_ptr.vmem [resolvable:$true] %s27
      %s29 = sshll.u32 %s26, 4
      %33 = dma.hbm_to_vmem [thread:$0]  (%p22), %s25, %s29, %s28, [#allocation4], 64, 64, 4
    $region5: #{tpu_custom_call.1} parent=1 // pred_fallthru
      _
    // Predicated region
    $region6: #{tpu_custom_call.1} parent=1 // pred_check
      _
    $region7: #{tpu_custom_call.1} parent=1 // pred_check_branch
      %35 = sbr.rel (0) target = $region9
    $region8: #{tpu_custom_call.1} parent=1 // pred_region
      %s36 = sadd.s32 0, 0
      %p37 = scmp.lt.s32.totalorder %s36, 0
      %s38 = scalar_select %p37, %s36, 0
      %s39 = smul.u32 8, %s38
      %s40 = ssub.s32 1, %s39
      %s41 = smul.u32 16, %s40
      %s42 = smul.u32 %s41, 4
      %s44 = ssub.s32 512, %s42
      %45 = vsyncadd [#allocation7], %s44
      %p46 = scmp.ne.s32.totalorder 0, %s42
      %s47 = smul.addr %s39, 4
      %s48 = smul.addr %s47, 16
      %s49 = scalar_lea.hbm %s1, %s48
      %s50 = smul.u32 4, %s40
      %s51 = sshll.u32 [#allocation6], 4
      %s52 = int_to_ptr.vmem [resolvable:$true] %s51
      %s53 = sshll.u32 %s50, 4
      %57 = dma.hbm_to_vmem [thread:$0]  (%p46), %s49, %s53, %s52, [#allocation7], 64, 64, 4
    $region9: #{tpu_custom_call.1} parent=1 // pred_fallthru
      _
    // Predicated region
    $region10: #{tpu_custom_call.1} parent=1 // pred_check
      _
    $region11: #{tpu_custom_call.1} parent=1 // pred_check_branch
      %59 = sbr.rel (0) target = $region13
    $region12: #{tpu_custom_call.1} parent=1 // pred_region
      %60 = dma.done [#allocation4], 512
    $region13: #{tpu_custom_call.1} parent=1 // pred_fallthru
      _
    // Predicated region
    $region14: #{tpu_custom_call.1} parent=1 // pred_check
      _
    $region15: #{tpu_custom_call.1} parent=1 // pred_check_branch
      %62 = sbr.rel (0) target = $region17
    $region16: #{tpu_custom_call.1} parent=1 // pred_region
      %63 = dma.done [#allocation7], 512
    $region17: #{tpu_custom_call.1} parent=1 // pred_fallthru
      _
    %s64 = sadd.s32 0, 0
    %p65 = scmp.lt.s32.totalorder %s64, 0
    %s66 = scalar_select %p65, %s64, 0
    %s67 = smul.u32 8, %s66
    %s68 = ssub.s32 1, %s67
    %s69 = smul.u32 16, %s68
    %s70 = smul.u32 %s69, 4
    %s71 = sadd.s32 0, 0
    %p72 = scmp.lt.s32.totalorder %s71, 0
    %s73 = scalar_select %p72, %s71, 0
    %s74 = smul.u32 8, %s73
    %s75 = ssub.s32 1, %s74
    %s76 = smul.u32 16, %s75
    %s77 = smul.u32 %s76, 4
    %p78 = scmp.eq.s32.totalorder 0, 0
    // Predicated region
    $region18: #{tpu_custom_call.1} parent=1 // pred_check
      %p79 = pneg %p78
    $region19: #{tpu_custom_call.1} parent=1 // pred_check_branch
      %81 = sbr.rel (%p79) target = $region21
    $region20: #{tpu_custom_call.1} parent=1 // pred_region
      %82 = vst [vmem:[#allocation2] sm:$0xff] 0.0
      %83 = vst [vmem:[#allocation2 + $0x8] sm:$0xff] 0.0
      %84 = vst [vmem:[#allocation2 + $0x10] sm:$0xff] 0.0
      %85 = vst [vmem:[#allocation2 + $0x18] sm:$0xff] 0.0
    $region21: #{tpu_custom_call.1} parent=1 // pred_fallthru
      _
    %v86 = vld [vmem:[#allocation3] sm:$0xf]
    %v87 = vld [vmem:[#allocation3 + $0x4] sm:$0xf]
    %v88 = vld [vmem:[#allocation3 + $0x8] sm:$0xf]
    %v89 = vld [vmem:[#allocation3 + $0xc] sm:$0xf]
    %v90 = vld [vmem:[#allocation3 + $0x10] sm:$0xf]
    %v91 = vld [vmem:[#allocation3 + $0x14] sm:$0xf]
    %v92 = vld [vmem:[#allocation3 + $0x18] sm:$0xf]
    %v93 = vld [vmem:[#allocation3 + $0x1c] sm:$0xf]
    %v94 = vld [vmem:[#allocation6] sm:$0xf]
    %v95 = vld [vmem:[#allocation6 + $0x4] sm:$0xf]
    %v96 = vld [vmem:[#allocation6 + $0x8] sm:$0xf]
    %v97 = vld [vmem:[#allocation6 + $0xc] sm:$0xf]
    %v98 = vld [vmem:[#allocation6 + $0x10] sm:$0xf]
    %v99 = vld [vmem:[#allocation6 + $0x14] sm:$0xf]
    %v100 = vld [vmem:[#allocation6 + $0x18] sm:$0xf]
    %v101 = vld [vmem:[#allocation6 + $0x1c] sm:$0xf]
    %v102 = vadd.f32 %v86, 1e-06
    %v103 = vadd.f32 %v87, 1e-06
    %v104 = vadd.f32 %v88, 1e-06
    %v105 = vadd.f32 %v89, 1e-06
    %v106 = vadd.f32 %v90, 1e-06
    %v107 = vadd.f32 %v91, 1e-06
    %v108 = vadd.f32 %v92, 1e-06
    %v109 = vadd.f32 %v93, 1e-06
    %v110 = vlog2.pop %v102
    %v111 = vmul.f32 %v110, 0.6931472
    %v112 = vlog2.pop %v103
    %v113 = vmul.f32 %v112, 0.6931472
    %v114 = vlog2.pop %v104
    %v115 = vmul.f32 %v114, 0.6931472
    %v116 = vlog2.pop %v105
    %v117 = vmul.f32 %v116, 0.6931472
    %v118 = vlog2.pop %v106
    %v119 = vmul.f32 %v118, 0.6931472
    %v120 = vlog2.pop %v107
    %v121 = vmul.f32 %v120, 0.6931472
    %v122 = vlog2.pop %v108
    %v123 = vmul.f32 %v122, 0.6931472
    %v124 = vlog2.pop %v109
    %v125 = vmul.f32 %v124, 0.6931472
    %v126 = vadd.f32 %v94, 1e-06
    %v127 = vadd.f32 %v95, 1e-06
    %v128 = vadd.f32 %v96, 1e-06
    %v129 = vadd.f32 %v97, 1e-06
    %v130 = vadd.f32 %v98, 1e-06
    %v131 = vadd.f32 %v99, 1e-06
    %v132 = vadd.f32 %v100, 1e-06
    %v133 = vadd.f32 %v101, 1e-06
    %v134 = vlog2.pop %v126
    %v135 = vmul.f32 %v134, 0.6931472
    %v136 = vlog2.pop %v127
    %v137 = vmul.f32 %v136, 0.6931472
    %v138 = vlog2.pop %v128
    %v139 = vmul.f32 %v138, 0.6931472
    %v140 = vlog2.pop %v129
    %v141 = vmul.f32 %v140, 0.6931472
    %v142 = vlog2.pop %v130
    %v143 = vmul.f32 %v142, 0.6931472
    %v144 = vlog2.pop %v131
    %v145 = vmul.f32 %v144, 0.6931472
    %v146 = vlog2.pop %v132
    %v147 = vmul.f32 %v146, 0.6931472
    %v148 = vlog2.pop %v133
    %v149 = vmul.f32 %v148, 0.6931472
    %v150 = vsub.f32 %v111, %v135
    %v151 = vsub.f32 %v113, %v137
    %v152 = vsub.f32 %v115, %v139
    %v153 = vsub.f32 %v117, %v141
    %v154 = vsub.f32 %v119, %v143
    %v155 = vsub.f32 %v121, %v145
    %v156 = vsub.f32 %v123, %v147
    %v157 = vsub.f32 %v125, %v149
    %v158 = vand.u32 2147483647, %v150
    %v159 = vand.u32 2147483647, %v151
    %v160 = vand.u32 2147483647, %v152
    %v161 = vand.u32 2147483647, %v153
    %v162 = vand.u32 2147483647, %v154
    %v163 = vand.u32 2147483647, %v155
    %v164 = vand.u32 2147483647, %v156
    %v165 = vand.u32 2147483647, %v157
    %s166 = sadd.s32 0, 0
    %p167 = scmp.lt.s32.totalorder %s166, 1
    %p168 = scmp.eq.s32.totalorder %s166, 0
    %p169 = scmp.ne.s32.totalorder %s166, 0
    %p170 = pnand %p167, %p169
    %p171 = pneg %p170
    // Predicated region
    $region22: #{tpu_custom_call.1} parent=1 // pred_check
      _
    $region23: #{tpu_custom_call.1} parent=1 // pred_check_branch
      %173 = sbr.rel (%p170) target = $region25
    $region24: #{tpu_custom_call.1} parent=1 // pred_region
      %v174 = vld [vmem:[#allocation2] sm:$0xff]
      %v175 = vld [vmem:[#allocation2 + $0x8] sm:$0xff]
      %v176 = vld [vmem:[#allocation2 + $0x10] sm:$0xff]
      %v177 = vld [vmem:[#allocation2 + $0x18] sm:$0xff]
      %v178 = vadd.f32 %v158, 0.0
      %v179 = vadd.f32 %v159, 0.0
      %v180 = vadd.f32 %v160, 0.0
      %v181 = vadd.f32 %v161, 0.0
      %v182 = vadd.f32 %v162, 0.0
      %v183 = vadd.f32 %v163, 0.0
      %v184 = vadd.f32 %v164, 0.0
      %v185 = vadd.f32 %v165, 0.0
      %v194 = vcombine.low %v178, %v179
      %v195 = vcombine.low %v180, %v181
      %v196 = vcombine.low %v182, %v183
      %v197 = vcombine.low %v184, %v185
      %v199 = vunpack.c.l.s4 1966171168
      %v200 = vunpack.c.0.s8 %v199
      %v201 = vlaneseq
      %v202 = vshrl.u32 %v201, 7
      %v203 = vsub.s32 %v200, %v202
      %v204 = vrot.slane %v194, %v203
      %v206 = vunpack.c.l.s4 1966171168
      %v207 = vunpack.c.0.s8 %v206
      %v208 = vlaneseq
      %v209 = vshrl.u32 %v208, 7
      %v210 = vsub.s32 %v207, %v209
      %v211 = vrot.slane %v195, %v210
      %v213 = vunpack.c.l.s4 1966171168
      %v214 = vunpack.c.0.s8 %v213
      %v215 = vlaneseq
      %v216 = vshrl.u32 %v215, 7
      %v217 = vsub.s32 %v214, %v216
      %v218 = vrot.slane %v196, %v217
      %v220 = vunpack.c.l.s4 1966171168
      %v221 = vunpack.c.0.s8 %v220
      %v222 = vlaneseq
      %v223 = vshrl.u32 %v222, 7
      %v224 = vsub.s32 %v221, %v223
      %v225 = vrot.slane %v197, %v224
      %v226 = vcombine.low %v204, %v211
      %v227 = vcombine.high %v204, %v211
      %v228 = vcombine.low %v218, %v225
      %v229 = vcombine.high %v218, %v225
      %v231 = vunpack.c.l.s4 1966171168
      %v232 = vunpack.c.0.s8 %v231
      %v233 = vlaneseq
      %v234 = vshrl.u32 %v233, 7
      %v235 = vsub.s32 %v232, %v234
      %v236 = vrot.slane %v226, %v235
      %v238 = vunpack.c.l.s4 1966171168
      %v239 = vunpack.c.0.s8 %v238
      %v240 = vlaneseq
      %v241 = vshrl.u32 %v240, 7
      %v242 = vsub.s32 %v239, %v241
      %v243 = vrot.slane %v227, %v242
      %v245 = vunpack.c.l.s4 1966171168
      %v246 = vunpack.c.0.s8 %v245
      %v247 = vlaneseq
      %v248 = vshrl.u32 %v247, 7
      %v249 = vsub.s32 %v246, %v248
      %v250 = vrot.slane %v228, %v249
      %v252 = vunpack.c.l.s4 1966171168
      %v253 = vunpack.c.0.s8 %v252
      %v254 = vlaneseq
      %v255 = vshrl.u32 %v254, 7
      %v256 = vsub.s32 %v253, %v255
      %v257 = vrot.slane %v229, %v256
      %v258 = vcombine.low %v236, %v250
      %v259 = vcombine.high %v236, %v250
      %v260 = vcombine.low %v243, %v257
      %v261 = vcombine.high %v243, %v257
      %v266 = vadd.f32 %v174, %v258
      %v267 = vadd.f32 %v175, %v260
      %v268 = vadd.f32 %v176, %v259
      %v269 = vadd.f32 %v177, %v261
      %270 = vst [vmem:[#allocation2] sm:$0xff] %v266
      %271 = vst [vmem:[#allocation2 + $0x8] sm:$0xff] %v267
      %272 = vst [vmem:[#allocation2 + $0x10] sm:$0xff] %v268
      %273 = vst [vmem:[#allocation2 + $0x18] sm:$0xff] %v269
    $region25: #{tpu_custom_call.1} parent=1 // pred_fallthru
      _
    // Predicated region
    $region26: #{tpu_custom_call.1} parent=1 // pred_check
      %p274 = pneg %p168
    $region27: #{tpu_custom_call.1} parent=1 // pred_check_branch
      %276 = sbr.rel (%p274) target = $region29
    $region28: #{tpu_custom_call.1} parent=1 // pred_region
      %v277 = vlaneseq
      %v278 = vshrl.u32 %v277, 7
      %s279 = smul.u32 %s166, 8
      %v280 = vstv %s279
      %v281 = vadd.s32 %v280, %v278
      %vm282 = vcmp.lt.s32.totalorder %v281, 1
      %v283 = vsel %vm282, 1, 0
      %vm284 = vcmp.eq.s32.totalorder %v283, 1
      %v293 = vcombine.low %v158, %v159
      %v294 = vcombine.low %v160, %v161
      %v295 = vcombine.low %v162, %v163
      %v296 = vcombine.low %v164, %v165
      %v298 = vunpack.c.l.s4 1966171168
      %v299 = vunpack.c.0.s8 %v298
      %v300 = vlaneseq
      %v301 = vshrl.u32 %v300, 7
      %v302 = vsub.s32 %v299, %v301
      %v303 = vrot.slane %v293, %v302
      %v305 = vunpack.c.l.s4 1966171168
      %v306 = vunpack.c.0.s8 %v305
      %v307 = vlaneseq
      %v308 = vshrl.u32 %v307, 7
      %v309 = vsub.s32 %v306, %v308
      %v310 = vrot.slane %v294, %v309
      %v312 = vunpack.c.l.s4 1966171168
      %v313 = vunpack.c.0.s8 %v312
      %v314 = vlaneseq
      %v315 = vshrl.u32 %v314, 7
      %v316 = vsub.s32 %v313, %v315
      %v317 = vrot.slane %v295, %v316
      %v319 = vunpack.c.l.s4 1966171168
      %v320 = vunpack.c.0.s8 %v319
      %v321 = vlaneseq
      %v322 = vshrl.u32 %v321, 7
      %v323 = vsub.s32 %v320, %v322
      %v324 = vrot.slane %v296, %v323
      %v325 = vcombine.low %v303, %v310
      %v326 = vcombine.high %v303, %v310
      %v327 = vcombine.low %v317, %v324
      %v328 = vcombine.high %v317, %v324
      %v330 = vunpack.c.l.s4 1966171168
      %v331 = vunpack.c.0.s8 %v330
      %v332 = vlaneseq
      %v333 = vshrl.u32 %v332, 7
      %v334 = vsub.s32 %v331, %v333
      %v335 = vrot.slane %v325, %v334
      %v337 = vunpack.c.l.s4 1966171168
      %v338 = vunpack.c.0.s8 %v337
      %v339 = vlaneseq
      %v340 = vshrl.u32 %v339, 7
      %v341 = vsub.s32 %v338, %v340
      %v342 = vrot.slane %v326, %v341
      %v344 = vunpack.c.l.s4 1966171168
      %v345 = vunpack.c.0.s8 %v344
      %v346 = vlaneseq
      %v347 = vshrl.u32 %v346, 7
      %v348 = vsub.s32 %v345, %v347
      %v349 = vrot.slane %v327, %v348
      %v351 = vunpack.c.l.s4 1966171168
      %v352 = vunpack.c.0.s8 %v351
      %v353 = vlaneseq
      %v354 = vshrl.u32 %v353, 7
      %v355 = vsub.s32 %v352, %v354
      %v356 = vrot.slane %v328, %v355
      %v357 = vcombine.low %v335, %v349
      %v358 = vcombine.high %v335, %v349
      %v359 = vcombine.low %v342, %v356
      %v360 = vcombine.high %v342, %v356
      %v365 = vsel %vm284, %v357, 0.0
      %v366 = vsel %vm284, %v359, 0.0
      %v367 = vsel %vm284, %v358, 0.0
      %v368 = vsel %vm284, %v360, 0.0
      %v369 = vld [vmem:[#allocation2] sm:$0xff]
      %v370 = vld [vmem:[#allocation2 + $0x8] sm:$0xff]
      %v371 = vld [vmem:[#allocation2 + $0x10] sm:$0xff]
      %v372 = vld [vmem:[#allocation2 + $0x18] sm:$0xff]
      %v373 = vadd.f32 %v365, 0.0
      %v374 = vadd.f32 %v366, 0.0
      %v375 = vadd.f32 %v367, 0.0
      %v376 = vadd.f32 %v368, 0.0
      %v377 = vadd.f32 %v369, %v373
      %v378 = vadd.f32 %v370, %v374
      %v379 = vadd.f32 %v371, %v375
      %v380 = vadd.f32 %v372, %v376
      %381 = vst [vmem:[#allocation2] sm:$0xff] %v377
      %382 = vst [vmem:[#allocation2 + $0x8] sm:$0xff] %v378
      %383 = vst [vmem:[#allocation2 + $0x10] sm:$0xff] %v379
      %384 = vst [vmem:[#allocation2 + $0x18] sm:$0xff] %v380
    $region29: #{tpu_custom_call.1} parent=1 // pred_fallthru
      _
    // Predicated region
    $region30: #{tpu_custom_call.1} parent=1 // pred_check
      %p385 = pneg %p78
    $region31: #{tpu_custom_call.1} parent=1 // pred_check_branch
      %387 = sbr.rel (%p385) target = $region33
    $region32: #{tpu_custom_call.1} parent=1 // pred_region
      %v388 = vld [vmem:[#allocation2] sm:$0xff]
      %v389 = vld [vmem:[#allocation2 + $0x8] sm:$0xff]
      %v390 = vld [vmem:[#allocation2 + $0x10] sm:$0xff]
      %v391 = vld [vmem:[#allocation2 + $0x18] sm:$0xff]
      %v392 = vadd.f32 %v388, %v389
      %v393 = vadd.f32 %v392, %v390
      %v394 = vadd.f32 %v393, %v391
      %395 = vadd.xlane.f32.xlu0 %v394
      %v396 = vpop.xlane.xlu0 %395
      %v397 = vrot.slane %v396, 4
      %v398 = vadd.f32 %v396, %v397
      %v399 = vrot.slane %v398, 2
      %v400 = vadd.f32 %v398, %v399
      %v401 = vrot.slane %v400, 1
      %v402 = vadd.f32 %v400, %v401
      %s403 = vtos %v402
      %v404 = vstv %s403
      %vm405 = vcmask 0
      %406 = vst.msk [vmem:[#allocation8] sm:$0x1] %vm405, %v404
    $region33: #{tpu_custom_call.1} parent=1 // pred_fallthru
      _
    // Predicated region
    $region34: #{tpu_custom_call.1} parent=1 // pred_check
      _
    $region35: #{tpu_custom_call.1} parent=1 // pred_check_branch
      %408 = sbr.rel (0) target = $region37
    $region36: #{tpu_custom_call.1} parent=1 // pred_region
      %s410 = ssub.s32 16, 16
      %411 = vsyncadd [#allocation5], %s410
      %s413 = sshll.u32 [#allocation8], 4
      %s414 = int_to_ptr.vmem [resolvable:$true] %s413
      %416 = dma.vmem_to_hbm [thread:$0]  %s414, 16, %s2, [#allocation5]
    $region37: #{tpu_custom_call.1} parent=1 // pred_fallthru
      _
    // Predicated region
    $region38: #{tpu_custom_call.1} parent=1 // pred_check
      _
    $region39: #{tpu_custom_call.1} parent=1 // pred_check_branch
      %418 = sbr.rel (0) target = $region41
    $region40: #{tpu_custom_call.1} parent=1 // pred_region
      %419 = dma.done [#allocation5], 16
    $region41: #{tpu_custom_call.1} parent=1 // pred_fallthru
      _
    %420 = vsyncpa [#allocation4], 1
    %421 = vsyncpa [#allocation7], 1
    %422 = vsyncpa [#allocation5], 1

</llo_original>
